<compile_context>
chip_gen: v6e
topology: v6e:2x2x1
jax: 0.10.0
libtpu: 0.0.40
codegen_flags: <defaults>
</compile_context>

<pallas_src>
import functools

import jax
import jax.numpy as jnp
from jax.experimental import pallas as pl
from jax.experimental.pallas import tpu as pltpu


def _round_up(x, m):
    return ((x + m - 1) // m) * m


# ----------------------------------------------------------------------------
# Fused matmul + BN (+ residual) (+ ReLU) Pallas kernel (single K step)
# ----------------------------------------------------------------------------
def _mm_kernel_factory(relu, has_res):
    def kernel(a_ref, w_ref, sb_ref, *rest):
        if has_res:
            res_ref, o_ref = rest
        else:
            (o_ref,) = rest
        acc = jnp.dot(a_ref[...], w_ref[...], preferred_element_type=jnp.float32)
        y = acc * sb_ref[0:1, :] + sb_ref[1:2, :]
        if has_res:
            y = y + res_ref[...]
        if relu:
            y = jnp.maximum(y, 0.0)
        o_ref[...] = y.astype(o_ref.dtype)

    return kernel


def _matmul_bn_act(a, wm, sb, *, relu, residual=None):
    """a:(Mp,Kp) bf16, wm:(Kp,Np) bf16 pre-folded, sb:(8,Np) f32 -> (Mp,Np) f32."""
    Mp, Kp = a.shape
    Kw, Np = wm.shape
    assert Kw == Kp
    # Keep >=2 blocks along N for the big-Cout layers (feeds both v7x TensorCores,
    # bounds the per-step VMEM working set); tiny layers run as a single block.
    tn = Np if Np <= 512 else Np // 2
    nj = Np // tn

    in_specs = [
        pl.BlockSpec((Mp, Kp), lambda j: (0, 0)),
        pl.BlockSpec((Kp, tn), lambda j: (0, j)),
        pl.BlockSpec((8, tn), lambda j: (0, j)),
    ]
    args = [a, wm, sb]
    has_res = residual is not None
    if has_res:
        in_specs.append(pl.BlockSpec((Mp, tn), lambda j: (0, j)))
        args.append(residual)

    bytes_accessed = (a.size * a.dtype.itemsize + wm.size * wm.dtype.itemsize
                      + sb.size * 4 + Mp * Np * 4
                      + (Mp * Np * 4 if has_res else 0))
    out = pl.pallas_call(
        _mm_kernel_factory(relu, has_res),
        out_shape=jax.ShapeDtypeStruct((Mp, Np), jnp.float32),
        grid=(nj,),
        in_specs=in_specs,
        out_specs=pl.BlockSpec((Mp, tn), lambda j: (0, j)),
        compiler_params=pltpu.CompilerParams(
            dimension_semantics=("parallel",),
            vmem_limit_bytes=32 * 1024 * 1024),
        cost_estimate=pl.CostEstimate(
            flops=2 * Mp * Kp * Np, transcendentals=0,
            bytes_accessed=bytes_accessed),
    )(*args)
    return out


# ----------------------------------------------------------------------------
# Conv2d + BN (+ residual) (+ ReLU) via im2col + fused Pallas matmul
# ----------------------------------------------------------------------------
@functools.lru_cache(maxsize=None)
def _get_conv_bn_fn(k, cout, stride, dilation, padding, relu, has_res):
    def run(x, wm, sb, residual=None):
        N, H, W, Cin = x.shape
        Kp, Np = wm.shape
        if k == 1 and stride == 1 and padding == 0 and dilation == 1:
            Ho, Wo = H, W
            a = x.reshape(N * H * W, Cin).astype(jnp.bfloat16)
        else:
            Ho = (H + 2 * padding - dilation * (k - 1) - 1) // stride + 1
            Wo = (W + 2 * padding - dilation * (k - 1) - 1) // stride + 1
            xp = jnp.pad(x.astype(jnp.bfloat16),
                         ((0, 0), (padding, padding), (padding, padding), (0, 0)))
            patches = [
                xp[:, i * dilation:i * dilation + (Ho - 1) * stride + 1:stride,
                   j * dilation:j * dilation + (Wo - 1) * stride + 1:stride, :]
                for i in range(k) for j in range(k)]
            # TODO(synk): patch extraction could be fused into the matmul kernel via a
            # kh*kw grid axis; left in JAX since activations here are tiny.
            a = jnp.concatenate(patches, axis=-1).reshape(N * Ho * Wo, k * k * Cin)
        M, K = a.shape
        Mp = _round_up(M, 8)
        if (Mp, Kp) != (M, K):
            a = jnp.pad(a, ((0, Mp - M), (0, Kp - K)))

        res = None
        if has_res:
            res = residual.reshape(M, cout).astype(jnp.float32)
            if (Mp, Np) != (M, cout):
                res = jnp.pad(res, ((0, Mp - M), (0, Np - cout)))

        out = _matmul_bn_act(a, wm, sb, relu=relu, residual=res)
        if (Mp, Np) != (M, cout):
            out = out[:M, :cout]
        return out.reshape(N, Ho, Wo, cout)

    if has_res:
        return jax.jit(lambda x, wm, sb, r: run(x, wm, sb, r))
    return jax.jit(lambda x, wm, sb: run(x, wm, sb))


def conv_bn(x, p, *, stride=1, dilation=1, padding=0, relu=False, residual=None):
    f = _get_conv_bn_fn(p["k"], p["cout"], stride, dilation, padding, relu,
                        residual is not None)
    if residual is not None:
        return f(x, p["wm"], p["sb"], residual)
    return f(x, p["wm"], p["sb"])


# ----------------------------------------------------------------------------
# Pooling (max / mean over stacked shifted windows) as a Pallas reduce kernel
# ----------------------------------------------------------------------------
def _reduce_kernel_factory(op):
    def kernel(x_ref, o_ref):
        if op == "max":
            o_ref[...] = jnp.max(x_ref[...], axis=0)
        else:
            o_ref[...] = jnp.mean(x_ref[...], axis=0)
    return kernel


@functools.lru_cache(maxsize=None)
def _get_reduce_fn(op):
    def f(stacked):
        R, M, C = stacked.shape
        return pl.pallas_call(
            _reduce_kernel_factory(op),
            out_shape=jax.ShapeDtypeStruct((M, C), jnp.float32),
            grid=(1,),
            in_specs=[pl.BlockSpec((R, M, C), lambda i: (0, 0, 0))],
            out_specs=pl.BlockSpec((M, C), lambda i: (0, 0)),
        )(stacked)
    return jax.jit(f)


def max_pool_3x3_s2_p1(x):
    N, H, W, C = x.shape
    Ho, Wo = (H + 2 - 3) // 2 + 1, (W + 2 - 3) // 2 + 1
    xp = jnp.pad(x, ((0, 0), (1, 1), (1, 1), (0, 0)), constant_values=-jnp.inf)
    sl = [xp[:, i:i + (Ho - 1) * 2 + 1:2, j:j + (Wo - 1) * 2 + 1:2, :]
          for i in range(3) for j in range(3)]
    stacked = jnp.stack(sl, 0).reshape(9, N * Ho * Wo, C)
    return _get_reduce_fn("max")(stacked).reshape(N, Ho, Wo, C)


def avg_pool_2x2_s2(x):  # nn.AvgPool2d(2, 2, ceil_mode=True) on even spatial dims
    N, H, W, C = x.shape
    Ho, Wo = H // 2, W // 2
    sl = [x[:, i:i + Ho * 2:2, j:j + Wo * 2:2, :] for i in range(2) for j in range(2)]
    stacked = jnp.stack(sl, 0).reshape(4, N * Ho * Wo, C)
    return _get_reduce_fn("mean")(stacked).reshape(N, Ho, Wo, C)


def avg_pool_2x2_s1_same(x):
    # timm AvgPool2dSame(2, stride=1): explicit zero pad right/bottom, then avg_pool2d
    # with padding=0 -> the manual zeros ARE included in the divisor (÷4), matching timm.
    N, H, W, C = x.shape
    xp = jnp.pad(x, ((0, 0), (0, 1), (0, 1), (0, 0)))
    sl = [xp[:, i:i + H, j:j + W, :] for i in range(2) for j in range(2)]
    stacked = jnp.stack(sl, 0).reshape(4, N * H * W, C)
    return _get_reduce_fn("mean")(stacked).reshape(N, H, W, C)


# ----------------------------------------------------------------------------
# Deterministic parameter construction (resnet50d, in_chans=2, output_stride=8)
# Weights are folded into matmul form (Kp,Np) bf16 + (8,Np) f32 scale/bias ONCE here.
# ----------------------------------------------------------------------------
def _bn_scale_bias(key, c):
    k1, k2, k3, k4 = jax.random.split(key, 4)
    gamma = 1.0 + 0.1 * jax.random.normal(k1, (c,), jnp.float32)
    beta = 0.1 * jax.random.normal(k2, (c,), jnp.float32)
    mean = 0.1 * jax.random.normal(k3, (c,), jnp.float32)
    var = 1.0 + 0.1 * jnp.abs(jax.random.normal(k4, (c,), jnp.float32))
    scale = gamma / jnp.sqrt(var + 1e-5)
    bias = beta - mean * scale
    return scale, bias


def _conv_bn_params(key, cin, cout, k):
    kw_, kb = jax.random.split(key)
    std = (2.0 / (cin * k * k)) ** 0.5
    w = std * jax.random.normal(kw_, (cout, cin, k, k), jnp.float32)
    s, b = _bn_scale_bias(kb, cout)
    K = k * k * cin
    Kp = _round_up(K, 128)
    Np = _round_up(cout, 128)
    wm = jnp.transpose(w, (2, 3, 1, 0)).reshape(K, cout)          # (kh*kw*Cin, Cout)
    wm = jnp.pad(wm, ((0, Kp - K), (0, Np - cout))).astype(jnp.bfloat16)
    sb = jnp.zeros((8, Np), jnp.float32).at[0, :cout].set(s).at[1, :cout].set(b)
    return {"wm": wm, "sb": sb, "cout": cout, "k": k}


def build_params(key):
    keys = iter(jax.random.split(key, 128))
    params = {
        # resnet50d deep stem: conv1 = [3x3 s2 (2->32), 3x3 (32->32), 3x3 (32->64)]
        # last conv's BN/ReLU are the module's bn1/act1 (folded here).
        "stem1": _conv_bn_params(next(keys), 2, 32, 3),
        "stem2": _conv_bn_params(next(keys), 32, 32, 3),
        "stem3": _conv_bn_params(next(keys), 32, 64, 3),
    }
    layers = []
    net_stride, dilation, prev_dilation, inplanes = 4, 1, 1, 64
    for stage_idx, (planes, nblocks) in enumerate([(64, 3), (128, 4), (256, 6), (512, 3)]):
        stride = 1 if stage_idx == 0 else 2
        if net_stride >= 8:           # output_stride = 8 -> dilate instead of stride
            dilation *= stride
            stride = 1
        else:
            net_stride *= stride
        blocks = []
        for bi in range(nblocks):
            bstride = stride if bi == 0 else 1
            ds_kind = None
            if bi == 0 and (stride != 1 or inplanes != planes * 4):
                if stride == 1 and dilation == 1:
                    ds_kind = "identity"       # layer1: 1x1 conv + BN only
                elif dilation > 1:
                    ds_kind = "avg_same"       # AvgPool2dSame(2, 1) + 1x1 conv + BN
                else:
                    ds_kind = "avg2"           # AvgPool2d(2, 2) + 1x1 conv + BN
            bp = {
                "conv1": _conv_bn_params(next(keys), inplanes, planes, 1),
                "conv2": _conv_bn_params(next(keys), planes, planes, 3),
                "conv3": _conv_bn_params(next(keys), planes, planes * 4, 1),
            }
            if ds_kind is not None:
                bp["down"] = _conv_bn_params(next(keys), inplanes, planes * 4, 1)
            blocks.append({"params": bp, "stride": bstride,
                           "first_dilation": prev_dilation, "ds": ds_kind})
            prev_dilation = dilation
            inplanes = planes * 4
        layers.append(blocks)
    params["layers"] = layers
    return params


# ----------------------------------------------------------------------------
# Forward pass (matches RegularStream_sub2.forward)
# ----------------------------------------------------------------------------
def _bottleneck(x, blk):
    p = blk["params"]
    fd = blk["first_dilation"]
    shortcut = x
    y = conv_bn(x, p["conv1"], relu=True)
    y = conv_bn(y, p["conv2"], stride=blk["stride"], dilation=fd, padding=fd, relu=True)
    if blk["ds"] is not None:
        sc = x
        if blk["ds"] == "avg2":
            sc = avg_pool_2x2_s2(sc)
        elif blk["ds"] == "avg_same":
            sc = avg_pool_2x2_s1_same(sc)
        shortcut = conv_bn(sc, p["down"], relu=False)
    # conv3 -> bn3 -> (+shortcut) -> ReLU, fused in one Pallas kernel
    return conv_bn(y, p["conv3"], relu=True, residual=shortcut)


def regular_stream_sub2(x_nchw, params):
    x = jnp.transpose(x_nchw, (0, 2, 3, 1)).astype(jnp.float32)  # NCHW -> NHWC
    x = conv_bn(x, params["stem1"], stride=2, padding=1, relu=True)
    x = conv_bn(x, params["stem2"], stride=1, padding=1, relu=True)
    x = conv_bn(x, params["stem3"], stride=1, padding=1, relu=True)   # == bn1 + act1
    stem_out = x
    r = max_pool_3x3_s2_p1(x)                                         # res0
    feats = []
    for layer in params["layers"]:
        for blk in layer:
            r = _bottleneck(r, blk)
        feats.append(r)
    res1, res2, res3, res4 = feats
    return stem_out, res1, res2, res3, res4


if __name__ == "__main__":
    key = jax.random.PRNGKey(0)
    pkey, xkey = jax.random.split(key)
    params = build_params(pkey)
    x = jax.random.normal(xkey, (2, 2, 32, 32), jnp.float32)  # NCHW, in_chans=2

    outs = regular_stream_sub2(x, params)
    outs = jax.block_until_ready(outs)

    expected = [(2, 16, 16, 64), (2, 8, 8, 256), (2, 4, 4, 512),
                (2, 4, 4, 1024), (2, 4, 4, 2048)]  # NHWC
    for o, s in zip(outs, expected):
        assert o.shape == s, (o.shape, s)
        assert bool(jnp.all(jnp.isfinite(o)))
    print("KERNEL_OK")
</pallas_src>

<mosaic_0001>
module attributes {stable_mosaic.version = 11 : i64} {
  func.func @kernel(%arg0: i32, %arg1: memref<512x128xbf16, #tpu.memory_space<vmem>>, %arg2: memref<128x128xbf16, #tpu.memory_space<vmem>>, %arg3: memref<8x128xf32, #tpu.memory_space<vmem>>, %arg4: memref<512x128xf32, #tpu.memory_space<vmem>>) attributes {dimension_semantics = [#tpu.dimension_semantics<parallel>], iteration_bounds = array<i64: 1>, scalar_prefetch = 0 : i64, scratch_operands = 0 : i64, tpu.core_type = #tpu.core_type<tc>, window_params = [{pipeline_mode = #tpu.pipeline_mode<synchronous>, transform_indices = @transform_0, window_bounds = array<i64: 512, 128>}, {transform_indices = @transform_1, window_bounds = array<i64: 128, 128>}, {transform_indices = @transform_2, window_bounds = array<i64: 8, 128>}, {transform_indices = @transform_3, window_bounds = array<i64: 512, 128>}]} {
    %c0 = arith.constant 0 : index
    %c0_0 = arith.constant 0 : index
    %0 = vector.load %arg1[%c0, %c0_0] : memref<512x128xbf16, #tpu.memory_space<vmem>>, vector<512x128xbf16>
    %c0_1 = arith.constant 0 : index
    %c0_2 = arith.constant 0 : index
    %1 = vector.load %arg2[%c0_1, %c0_2] : memref<128x128xbf16, #tpu.memory_space<vmem>>, vector<128x128xbf16>
    %cst = arith.constant dense<0.000000e+00> : vector<512x128xf32>
    %2 = tpu.matmul %0, %1, %cst {dimension_numbers = #tpu.dot_dimension_numbers<[1], [0], [0], [1], [0, 0, 1, 1], [], []>} : vector<512x128xbf16>, vector<128x128xbf16>, vector<512x128xf32> -> vector<512x128xf32>
    %c0_3 = arith.constant 0 : index
    %c0_4 = arith.constant 0 : index
    %3 = vector.load %arg3[%c0_3, %c0_4] : memref<8x128xf32, #tpu.memory_space<vmem>>, vector<1x128xf32>
    %4 = vector.broadcast %3 : vector<1x128xf32> to vector<512x128xf32>
    %5 = arith.mulf %2, %4 : vector<512x128xf32>
    %c1 = arith.constant 1 : index
    %c0_5 = arith.constant 0 : index
    %6 = vector.load %arg3[%c1, %c0_5] : memref<8x128xf32, #tpu.memory_space<vmem>>, vector<1x128xf32>
    %7 = vector.broadcast %6 : vector<1x128xf32> to vector<512x128xf32>
    %8 = arith.addf %5, %7 : vector<512x128xf32>
    %cst_6 = arith.constant 0.000000e+00 : f32
    %9 = vector.broadcast %cst_6 : f32 to vector<512x128xf32>
    %10 = arith.maximumf %8, %9 : vector<512x128xf32>
    %c0_7 = arith.constant 0 : index
    %c0_8 = arith.constant 0 : index
    %11 = vector.load %arg4[%c0_7, %c0_8] : memref<512x128xf32, #tpu.memory_space<vmem>>, vector<512x128xf32>
    tpu.vector_store %arg4[%c0_7, %c0_8], %10 {strides = array<i32>} : memref<512x128xf32, #tpu.memory_space<vmem>>, vector<512x128xf32>,
    return
  }
  func.func @transform_0(%arg0: i32) -> (i32, i32) {
    %c0_i32 = arith.constant 0 : i32
    %c0_i32_0 = arith.constant 0 : i32
    %c0_i32_1 = arith.constant 0 : i32
    return %c0_i32, %c0_i32_0 : i32, i32
  }
  func.func @transform_1(%arg0: i32) -> (i32, i32) {
    %c0_i32 = arith.constant 0 : i32
    %c0_i32_0 = arith.constant 0 : i32
    return %c0_i32, %arg0 : i32, i32
  }
  func.func @transform_2(%arg0: i32) -> (i32, i32) {
    %c0_i32 = arith.constant 0 : i32
    %c0_i32_0 = arith.constant 0 : i32
    return %c0_i32, %arg0 : i32, i32
  }
  func.func @transform_3(%arg0: i32) -> (i32, i32) {
    %c0_i32 = arith.constant 0 : i32
    %c0_i32_0 = arith.constant 0 : i32
    return %c0_i32, %arg0 : i32, i32
  }
}

</mosaic_0001>

<llo_original>
// kernel: _lambda_.1
$region0: #{_lambda_.1}
  #allocation0 [shape = 'u32[]', space=smem, size = 0x4, offset = 0x4, fixed_abs, tag = 'smem constant byte address 0x4 - core index']
  #allocation1 [shape = 'u32[144,128]{1,0:T(1,128)}', space=vmem, size = 0x12000, scoped, tag = 'internal scratch']
  %s0 = inlined_call_operand.vmem [shape: bf16[512,128], index: 0, kind: input, shape index: {}]
  %s1 = inlined_call_operand.vmem [shape: bf16[128,128], index: 1, kind: input, shape index: {}]
  %s2 = inlined_call_operand.vmem [shape: f32[8,128], index: 2, kind: input, shape index: {}]
  %s3 = inlined_call_operand.hbm [shape: f32[512,128], index: 3, kind: output, shape index: {}]
  %s4 = sld [smem:[#allocation0]]
  $region22: #{_lambda_.1} parent=0
    _
  %s6 = ssub.s32 1, %s4
  %s7 = scalar_select 0, %s6, %s4
  $region1: #{_lambda_.1} parent=0
    #allocation2 [shape = 'u8[262144]{0}', space=vmem, size = 0x40000, scoped, tag = 'output window, operand 0, single buffered']
    #allocation3 [shape = 's32[1]{0}', space=sflag, size = 0x4, scoped, tag = 'scoped memory for _lambda_.1']
    %8 = vsyncpa [#allocation3], 0
    // Predicated region
    $region2: #{_lambda_.1} parent=1 // pred_check
      _
    $region3: #{_lambda_.1} parent=1 // pred_check_branch
      %10 = sbr.rel (0) target = $region5
    $region4: #{_lambda_.1} parent=1 // pred_region
      _
    $region5: #{_lambda_.1} parent=1 // pred_fallthru
      _
    // Predicated region
    $region6: #{_lambda_.1} parent=1 // pred_check
      _
    $region7: #{_lambda_.1} parent=1 // pred_check_branch
      %12 = sbr.rel (0) target = $region9
    $region8: #{_lambda_.1} parent=1 // pred_region
      _
    $region9: #{_lambda_.1} parent=1 // pred_fallthru
      _
    // Predicated region
    $region10: #{_lambda_.1} parent=1 // pred_check
      _
    $region11: #{_lambda_.1} parent=1 // pred_check_branch
      %14 = sbr.rel (0) target = $region13
    $region12: #{_lambda_.1} parent=1 // pred_region
      _
    $region13: #{_lambda_.1} parent=1 // pred_fallthru
      _
    %v16 = vld [vmem:[%s0] sm:$0xf]
    %v17 = vld [vmem:[%s0 + $0x4] sm:$0xf]
    %v18 = vld [vmem:[%s0 + $0x8] sm:$0xf]
    %v19 = vld [vmem:[%s0 + $0xc] sm:$0xf]
    %v20 = vld [vmem:[%s0 + $0x10] sm:$0xf]
    %v21 = vld [vmem:[%s0 + $0x14] sm:$0xf]
    %v22 = vld [vmem:[%s0 + $0x18] sm:$0xf]
    %v23 = vld [vmem:[%s0 + $0x1c] sm:$0xf]
    %v24 = vld [vmem:[%s0 + $0x20] sm:$0xf]
    %v25 = vld [vmem:[%s0 + $0x24] sm:$0xf]
    %v26 = vld [vmem:[%s0 + $0x28] sm:$0xf]
    %v27 = vld [vmem:[%s0 + $0x2c] sm:$0xf]
    %v28 = vld [vmem:[%s0 + $0x30] sm:$0xf]
    %v29 = vld [vmem:[%s0 + $0x34] sm:$0xf]
    %v30 = vld [vmem:[%s0 + $0x38] sm:$0xf]
    %v31 = vld [vmem:[%s0 + $0x3c] sm:$0xf]
    %v32 = vld [vmem:[%s0 + $0x40] sm:$0xf]
    %v33 = vld [vmem:[%s0 + $0x44] sm:$0xf]
    %v34 = vld [vmem:[%s0 + $0x48] sm:$0xf]
    %v35 = vld [vmem:[%s0 + $0x4c] sm:$0xf]
    %v36 = vld [vmem:[%s0 + $0x50] sm:$0xf]
    %v37 = vld [vmem:[%s0 + $0x54] sm:$0xf]
    %v38 = vld [vmem:[%s0 + $0x58] sm:$0xf]
    %v39 = vld [vmem:[%s0 + $0x5c] sm:$0xf]
    %v40 = vld [vmem:[%s0 + $0x60] sm:$0xf]
    %v41 = vld [vmem:[%s0 + $0x64] sm:$0xf]
    %v42 = vld [vmem:[%s0 + $0x68] sm:$0xf]
    %v43 = vld [vmem:[%s0 + $0x6c] sm:$0xf]
    %v44 = vld [vmem:[%s0 + $0x70] sm:$0xf]
    %v45 = vld [vmem:[%s0 + $0x74] sm:$0xf]
    %v46 = vld [vmem:[%s0 + $0x78] sm:$0xf]
    %v47 = vld [vmem:[%s0 + $0x7c] sm:$0xf]
    %v48 = vld [vmem:[%s0 + $0x80] sm:$0xf]
    %v49 = vld [vmem:[%s0 + $0x84] sm:$0xf]
    %v50 = vld [vmem:[%s0 + $0x88] sm:$0xf]
    %v51 = vld [vmem:[%s0 + $0x8c] sm:$0xf]
    %v52 = vld [vmem:[%s0 + $0x90] sm:$0xf]
    %v53 = vld [vmem:[%s0 + $0x94] sm:$0xf]
    %v54 = vld [vmem:[%s0 + $0x98] sm:$0xf]
    %v55 = vld [vmem:[%s0 + $0x9c] sm:$0xf]
    %v56 = vld [vmem:[%s0 + $0xa0] sm:$0xf]
    %v57 = vld [vmem:[%s0 + $0xa4] sm:$0xf]
    %v58 = vld [vmem:[%s0 + $0xa8] sm:$0xf]
    %v59 = vld [vmem:[%s0 + $0xac] sm:$0xf]
    %v60 = vld [vmem:[%s0 + $0xb0] sm:$0xf]
    %v61 = vld [vmem:[%s0 + $0xb4] sm:$0xf]
    %v62 = vld [vmem:[%s0 + $0xb8] sm:$0xf]
    %v63 = vld [vmem:[%s0 + $0xbc] sm:$0xf]
    %v64 = vld [vmem:[%s0 + $0xc0] sm:$0xf]
    %v65 = vld [vmem:[%s0 + $0xc4] sm:$0xf]
    %v66 = vld [vmem:[%s0 + $0xc8] sm:$0xf]
    %v67 = vld [vmem:[%s0 + $0xcc] sm:$0xf]
    %v68 = vld [vmem:[%s0 + $0xd0] sm:$0xf]
    %v69 = vld [vmem:[%s0 + $0xd4] sm:$0xf]
    %v70 = vld [vmem:[%s0 + $0xd8] sm:$0xf]
    %v71 = vld [vmem:[%s0 + $0xdc] sm:$0xf]
    %v72 = vld [vmem:[%s0 + $0xe0] sm:$0xf]
    %v73 = vld [vmem:[%s0 + $0xe4] sm:$0xf]
    %v74 = vld [vmem:[%s0 + $0xe8] sm:$0xf]
    %v75 = vld [vmem:[%s0 + $0xec] sm:$0xf]
    %v76 = vld [vmem:[%s0 + $0xf0] sm:$0xf]
    %v77 = vld [vmem:[%s0 + $0xf4] sm:$0xf]
    %v78 = vld [vmem:[%s0 + $0xf8] sm:$0xf]
    %v79 = vld [vmem:[%s0 + $0xfc] sm:$0xf]
    %v80 = vld [vmem:[%s1] sm:$0xf]
    %v81 = vld [vmem:[%s1 + $0x4] sm:$0xf]
    %v82 = vld [vmem:[%s1 + $0x8] sm:$0xf]
    %v83 = vld [vmem:[%s1 + $0xc] sm:$0xf]
    %v84 = vld [vmem:[%s1 + $0x10] sm:$0xf]
    %v85 = vld [vmem:[%s1 + $0x14] sm:$0xf]
    %v86 = vld [vmem:[%s1 + $0x18] sm:$0xf]
    %v87 = vld [vmem:[%s1 + $0x1c] sm:$0xf]
    %v88 = vld [vmem:[%s1 + $0x20] sm:$0xf]
    %v89 = vld [vmem:[%s1 + $0x24] sm:$0xf]
    %v90 = vld [vmem:[%s1 + $0x28] sm:$0xf]
    %v91 = vld [vmem:[%s1 + $0x2c] sm:$0xf]
    %v92 = vld [vmem:[%s1 + $0x30] sm:$0xf]
    %v93 = vld [vmem:[%s1 + $0x34] sm:$0xf]
    %v94 = vld [vmem:[%s1 + $0x38] sm:$0xf]
    %v95 = vld [vmem:[%s1 + $0x3c] sm:$0xf]
    %v160 = vunpack.c.l.b16 %v16
    %v161 = vunpack.c.l.b16 %v17
    %v162 = vunpack.c.l.b16 %v18
    %v163 = vunpack.c.l.b16 %v19
    %v164 = vunpack.c.l.b16 %v20
    %v165 = vunpack.c.l.b16 %v21
    %v166 = vunpack.c.l.b16 %v22
    %v167 = vunpack.c.l.b16 %v23
    %v168 = vunpack.c.l.b16 %v24
    %v169 = vunpack.c.l.b16 %v25
    %v170 = vunpack.c.l.b16 %v26
    %v171 = vunpack.c.l.b16 %v27
    %v172 = vunpack.c.l.b16 %v28
    %v173 = vunpack.c.l.b16 %v29
    %v174 = vunpack.c.l.b16 %v30
    %v175 = vunpack.c.l.b16 %v31
    %v176 = vunpack.c.l.b16 %v32
    %v177 = vunpack.c.l.b16 %v33
    %v178 = vunpack.c.l.b16 %v34
    %v179 = vunpack.c.l.b16 %v35
    %v180 = vunpack.c.l.b16 %v36
    %v181 = vunpack.c.l.b16 %v37
    %v182 = vunpack.c.l.b16 %v38
    %v183 = vunpack.c.l.b16 %v39
    %v184 = vunpack.c.l.b16 %v40
    %v185 = vunpack.c.l.b16 %v41
    %v186 = vunpack.c.l.b16 %v42
    %v187 = vunpack.c.l.b16 %v43
    %v188 = vunpack.c.l.b16 %v44
    %v189 = vunpack.c.l.b16 %v45
    %v190 = vunpack.c.l.b16 %v46
    %v191 = vunpack.c.l.b16 %v47
    %v192 = vunpack.c.l.b16 %v48
    %v193 = vunpack.c.l.b16 %v49
    %v194 = vunpack.c.l.b16 %v50
    %v195 = vunpack.c.l.b16 %v51
    %v196 = vunpack.c.l.b16 %v52
    %v197 = vunpack.c.l.b16 %v53
    %v198 = vunpack.c.l.b16 %v54
    %v199 = vunpack.c.l.b16 %v55
    %v200 = vunpack.c.l.b16 %v56
    %v201 = vunpack.c.l.b16 %v57
    %v202 = vunpack.c.l.b16 %v58
    %v203 = vunpack.c.l.b16 %v59
    %v204 = vunpack.c.l.b16 %v60
    %v205 = vunpack.c.l.b16 %v61
    %v206 = vunpack.c.l.b16 %v62
    %v207 = vunpack.c.l.b16 %v63
    %v208 = vunpack.c.l.b16 %v64
    %v209 = vunpack.c.l.b16 %v65
    %v210 = vunpack.c.l.b16 %v66
    %v211 = vunpack.c.l.b16 %v67
    %v212 = vunpack.c.l.b16 %v68
    %v213 = vunpack.c.l.b16 %v69
    %v214 = vunpack.c.l.b16 %v70
    %v215 = vunpack.c.l.b16 %v71
    %v216 = vunpack.c.l.b16 %v72
    %v217 = vunpack.c.l.b16 %v73
    %v218 = vunpack.c.l.b16 %v74
    %v219 = vunpack.c.l.b16 %v75
    %v220 = vunpack.c.l.b16 %v76
    %v221 = vunpack.c.l.b16 %v77
    %v222 = vunpack.c.l.b16 %v78
    %v223 = vunpack.c.l.b16 %v79
    %v224 = vpack.c.b16 %v161, %v160
    %v225 = vpack.c.b16 %v163, %v162
    %v226 = vpack.c.b16 %v165, %v164
    %v227 = vpack.c.b16 %v167, %v166
    %v228 = vpack.c.b16 %v169, %v168
    %v229 = vpack.c.b16 %v171, %v170
    %v230 = vpack.c.b16 %v173, %v172
    %v231 = vpack.c.b16 %v175, %v174
    %v232 = vpack.c.b16 %v177, %v176
    %v233 = vpack.c.b16 %v179, %v178
    %v234 = vpack.c.b16 %v181, %v180
    %v235 = vpack.c.b16 %v183, %v182
    %v236 = vpack.c.b16 %v185, %v184
    %v237 = vpack.c.b16 %v187, %v186
    %v238 = vpack.c.b16 %v189, %v188
    %v239 = vpack.c.b16 %v191, %v190
    %v240 = vpack.c.b16 %v193, %v192
    %v241 = vpack.c.b16 %v195, %v194
    %v242 = vpack.c.b16 %v197, %v196
    %v243 = vpack.c.b16 %v199, %v198
    %v244 = vpack.c.b16 %v201, %v200
    %v245 = vpack.c.b16 %v203, %v202
    %v246 = vpack.c.b16 %v205, %v204
    %v247 = vpack.c.b16 %v207, %v206
    %v248 = vpack.c.b16 %v209, %v208
    %v249 = vpack.c.b16 %v211, %v210
    %v250 = vpack.c.b16 %v213, %v212
    %v251 = vpack.c.b16 %v215, %v214
    %v252 = vpack.c.b16 %v217, %v216
    %v253 = vpack.c.b16 %v219, %v218
    %v254 = vpack.c.b16 %v221, %v220
    %v255 = vpack.c.b16 %v223, %v222
    %v304 = vunpack.c.l.b16 %v80
    %v305 = vunpack.c.l.b16 %v81
    %v306 = vunpack.c.l.b16 %v82
    %v307 = vunpack.c.l.b16 %v83
    %v308 = vunpack.c.l.b16 %v84
    %v309 = vunpack.c.l.b16 %v85
    %v310 = vunpack.c.l.b16 %v86
    %v311 = vunpack.c.l.b16 %v87
    %v312 = vunpack.c.l.b16 %v88
    %v313 = vunpack.c.l.b16 %v89
    %v314 = vunpack.c.l.b16 %v90
    %v315 = vunpack.c.l.b16 %v91
    %v316 = vunpack.c.l.b16 %v92
    %v317 = vunpack.c.l.b16 %v93
    %v318 = vunpack.c.l.b16 %v94
    %v319 = vunpack.c.l.b16 %v95
    %v320 = vpack.c.b16 %v305, %v304
    %v321 = vpack.c.b16 %v307, %v306
    %v322 = vpack.c.b16 %v309, %v308
    %v323 = vpack.c.b16 %v311, %v310
    %v324 = vpack.c.b16 %v313, %v312
    %v325 = vpack.c.b16 %v315, %v314
    %v326 = vpack.c.b16 %v317, %v316
    %v327 = vpack.c.b16 %v319, %v318
    %336 = vmatprep.subr.bf16.mxu0 0
    %337 = vmatpush1.bf16.msra.mxu0 %v327
    %338 = vmatprep.subr.bf16.mxu0 0
    %339 = vmatpush1.bf16.msra.mxu0 %v326
    %340 = vmatprep.subr.bf16.mxu0 0
    %341 = vmatpush1.bf16.msra.mxu0 %v325
    %342 = vmatprep.subr.bf16.mxu0 0
    %343 = vmatpush1.bf16.msra.mxu0 %v324
    %344 = vmatprep.subr.bf16.mxu0 0
    %345 = vmatpush1.bf16.msra.mxu0 %v323
    %346 = vmatprep.subr.bf16.mxu0 0
    %347 = vmatpush1.bf16.msra.mxu0 %v322
    %348 = vmatprep.subr.bf16.mxu0 0
    %349 = vmatpush1.bf16.msra.mxu0 %v321
    %350 = vmatprep.subr.bf16.mxu0 0
    %351 = vmatpush1.bf16.msra.mxu0 %v320
    %352 = vmatprep.subr.bf16.mxu0 0
    %353 = vmatpush2.bf16.msra.mxu0 0
    %354 = vmatprep.subr.bf16.mxu0 0
    %355 = vmatpush2.bf16.msra.mxu0 0
    %356 = vmatprep.subr.bf16.mxu0 0
    %357 = vmatpush2.bf16.msra.mxu0 0
    %358 = vmatprep.subr.bf16.mxu0 0
    %359 = vmatpush2.bf16.msra.mxu0 0
    %360 = vmatprep.subr.bf16.mxu0 0
    %361 = vmatpush2.bf16.msra.mxu0 0
    %362 = vmatprep.subr.bf16.mxu0 0
    %363 = vmatpush2.bf16.msra.mxu0 0
    %364 = vmatprep.subr.bf16.mxu0 0
    %365 = vmatpush2.bf16.msra.mxu0 0
    %366 = vmatprep.subr.bf16.mxu0 0
    %367 = vmatpush2.bf16.msra.mxu0 0
    %368 = vmatprep.mubr.bf16.mxu0 0
    %369 = vmatmul.mubr.bf16.gmra.mxu0 %v224
    %v370 = vpop.f32.mrf.mxu0
    %v371 = vadd.f32 0.0, %v370
    %v372 = vpop.f32.mrf.mxu0
    %v373 = vpop.f32.mrf.mxu0
    %v374 = vadd.f32 0.0, %v373
    %v375 = vpop.f32.mrf.mxu0
    %376 = vmatprep.mubr.bf16.mxu0 0
    %377 = vmatmul.mubr.bf16.gmra.mxu0 %v225
    %v378 = vpop.f32.mrf.mxu0
    %v379 = vadd.f32 0.0, %v378
    %v380 = vpop.f32.mrf.mxu0
    %v381 = vpop.f32.mrf.mxu0
    %v382 = vadd.f32 0.0, %v381
    %v383 = vpop.f32.mrf.mxu0
    %384 = vmatprep.mubr.bf16.mxu0 0
    %385 = vmatmul.mubr.bf16.gmra.mxu0 %v226
    %v386 = vpop.f32.mrf.mxu0
    %v387 = vadd.f32 0.0, %v386
    %v388 = vpop.f32.mrf.mxu0
    %v389 = vpop.f32.mrf.mxu0
    %v390 = vadd.f32 0.0, %v389
    %v391 = vpop.f32.mrf.mxu0
    %392 = vmatprep.mubr.bf16.mxu0 0
    %393 = vmatmul.mubr.bf16.gmra.mxu0 %v227
    %v394 = vpop.f32.mrf.mxu0
    %v395 = vadd.f32 0.0, %v394
    %v396 = vpop.f32.mrf.mxu0
    %v397 = vpop.f32.mrf.mxu0
    %v398 = vadd.f32 0.0, %v397
    %v399 = vpop.f32.mrf.mxu0
    %400 = vmatprep.mubr.bf16.mxu0 0
    %401 = vmatmul.mubr.bf16.gmra.mxu0 %v228
    %v402 = vpop.f32.mrf.mxu0
    %v403 = vadd.f32 0.0, %v402
    %v404 = vpop.f32.mrf.mxu0
    %v405 = vpop.f32.mrf.mxu0
    %v406 = vadd.f32 0.0, %v405
    %v407 = vpop.f32.mrf.mxu0
    %408 = vmatprep.mubr.bf16.mxu0 0
    %409 = vmatmul.mubr.bf16.gmra.mxu0 %v229
    %v410 = vpop.f32.mrf.mxu0
    %v411 = vadd.f32 0.0, %v410
    %v412 = vpop.f32.mrf.mxu0
    %v413 = vpop.f32.mrf.mxu0
    %v414 = vadd.f32 0.0, %v413
    %v415 = vpop.f32.mrf.mxu0
    %416 = vmatprep.mubr.bf16.mxu0 0
    %417 = vmatmul.mubr.bf16.gmra.mxu0 %v230
    %v418 = vpop.f32.mrf.mxu0
    %v419 = vadd.f32 0.0, %v418
    %v420 = vpop.f32.mrf.mxu0
    %v421 = vpop.f32.mrf.mxu0
    %v422 = vadd.f32 0.0, %v421
    %v423 = vpop.f32.mrf.mxu0
    %424 = vmatprep.mubr.bf16.mxu0 0
    %425 = vmatmul.mubr.bf16.gmra.mxu0 %v231
    %v426 = vpop.f32.mrf.mxu0
    %v427 = vadd.f32 0.0, %v426
    %v428 = vpop.f32.mrf.mxu0
    %v429 = vpop.f32.mrf.mxu0
    %v430 = vadd.f32 0.0, %v429
    %v431 = vpop.f32.mrf.mxu0
    %432 = vmatprep.mubr.bf16.mxu0 0
    %433 = vmatmul.mubr.bf16.gmra.mxu0 %v232
    %v434 = vpop.f32.mrf.mxu0
    %v435 = vadd.f32 0.0, %v434
    %v436 = vpop.f32.mrf.mxu0
    %v437 = vpop.f32.mrf.mxu0
    %v438 = vadd.f32 0.0, %v437
    %v439 = vpop.f32.mrf.mxu0
    %440 = vmatprep.mubr.bf16.mxu0 0
    %441 = vmatmul.mubr.bf16.gmra.mxu0 %v233
    %v442 = vpop.f32.mrf.mxu0
    %v443 = vadd.f32 0.0, %v442
    %v444 = vpop.f32.mrf.mxu0
    %v445 = vpop.f32.mrf.mxu0
    %v446 = vadd.f32 0.0, %v445
    %v447 = vpop.f32.mrf.mxu0
    %448 = vmatprep.mubr.bf16.mxu0 0
    %449 = vmatmul.mubr.bf16.gmra.mxu0 %v234
    %v450 = vpop.f32.mrf.mxu0
    %v451 = vadd.f32 0.0, %v450
    %v452 = vpop.f32.mrf.mxu0
    %v453 = vpop.f32.mrf.mxu0
    %v454 = vadd.f32 0.0, %v453
    %v455 = vpop.f32.mrf.mxu0
    %456 = vmatprep.mubr.bf16.mxu0 0
    %457 = vmatmul.mubr.bf16.gmra.mxu0 %v235
    %v458 = vpop.f32.mrf.mxu0
    %v459 = vadd.f32 0.0, %v458
    %v460 = vpop.f32.mrf.mxu0
    %v461 = vpop.f32.mrf.mxu0
    %v462 = vadd.f32 0.0, %v461
    %v463 = vpop.f32.mrf.mxu0
    %464 = vmatprep.mubr.bf16.mxu0 0
    %465 = vmatmul.mubr.bf16.gmra.mxu0 %v236
    %v466 = vpop.f32.mrf.mxu0
    %v467 = vadd.f32 0.0, %v466
    %v468 = vpop.f32.mrf.mxu0
    %v469 = vpop.f32.mrf.mxu0
    %v470 = vadd.f32 0.0, %v469
    %v471 = vpop.f32.mrf.mxu0
    %472 = vmatprep.mubr.bf16.mxu0 0
    %473 = vmatmul.mubr.bf16.gmra.mxu0 %v237
    %v474 = vpop.f32.mrf.mxu0
    %v475 = vadd.f32 0.0, %v474
    %v476 = vpop.f32.mrf.mxu0
    %v477 = vpop.f32.mrf.mxu0
    %v478 = vadd.f32 0.0, %v477
    %v479 = vpop.f32.mrf.mxu0
    %480 = vmatprep.mubr.bf16.mxu0 0
    %481 = vmatmul.mubr.bf16.gmra.mxu0 %v238
    %v482 = vpop.f32.mrf.mxu0
    %v483 = vadd.f32 0.0, %v482
    %v484 = vpop.f32.mrf.mxu0
    %v485 = vpop.f32.mrf.mxu0
    %v486 = vadd.f32 0.0, %v485
    %v487 = vpop.f32.mrf.mxu0
    %488 = vmatprep.mubr.bf16.mxu0 0
    %489 = vmatmul.mubr.bf16.gmra.mxu0 %v239
    %v490 = vpop.f32.mrf.mxu0
    %v491 = vadd.f32 0.0, %v490
    %v492 = vpop.f32.mrf.mxu0
    %v493 = vpop.f32.mrf.mxu0
    %v494 = vadd.f32 0.0, %v493
    %v495 = vpop.f32.mrf.mxu0
    %496 = vmatprep.mubr.bf16.mxu0 0
    %497 = vmatmul.mubr.bf16.gmra.mxu0 %v240
    %v498 = vpop.f32.mrf.mxu0
    %v499 = vadd.f32 0.0, %v498
    %v500 = vpop.f32.mrf.mxu0
    %v501 = vpop.f32.mrf.mxu0
    %v502 = vadd.f32 0.0, %v501
    %v503 = vpop.f32.mrf.mxu0
    %504 = vmatprep.mubr.bf16.mxu0 0
    %505 = vmatmul.mubr.bf16.gmra.mxu0 %v241
    %v506 = vpop.f32.mrf.mxu0
    %v507 = vadd.f32 0.0, %v506
    %v508 = vpop.f32.mrf.mxu0
    %v509 = vpop.f32.mrf.mxu0
    %v510 = vadd.f32 0.0, %v509
    %v511 = vpop.f32.mrf.mxu0
    %512 = vmatprep.mubr.bf16.mxu0 0
    %513 = vmatmul.mubr.bf16.gmra.mxu0 %v242
    %v514 = vpop.f32.mrf.mxu0
    %v515 = vadd.f32 0.0, %v514
    %v516 = vpop.f32.mrf.mxu0
    %v517 = vpop.f32.mrf.mxu0
    %v518 = vadd.f32 0.0, %v517
    %v519 = vpop.f32.mrf.mxu0
    %520 = vmatprep.mubr.bf16.mxu0 0
    %521 = vmatmul.mubr.bf16.gmra.mxu0 %v243
    %v522 = vpop.f32.mrf.mxu0
    %v523 = vadd.f32 0.0, %v522
    %v524 = vpop.f32.mrf.mxu0
    %v525 = vpop.f32.mrf.mxu0
    %v526 = vadd.f32 0.0, %v525
    %v527 = vpop.f32.mrf.mxu0
    %528 = vmatprep.mubr.bf16.mxu0 0
    %529 = vmatmul.mubr.bf16.gmra.mxu0 %v244
    %v530 = vpop.f32.mrf.mxu0
    %v531 = vadd.f32 0.0, %v530
    %v532 = vpop.f32.mrf.mxu0
    %v533 = vpop.f32.mrf.mxu0
    %v534 = vadd.f32 0.0, %v533
    %v535 = vpop.f32.mrf.mxu0
    %536 = vmatprep.mubr.bf16.mxu0 0
    %537 = vmatmul.mubr.bf16.gmra.mxu0 %v245
    %v538 = vpop.f32.mrf.mxu0
    %v539 = vadd.f32 0.0, %v538
    %v540 = vpop.f32.mrf.mxu0
    %v541 = vpop.f32.mrf.mxu0
    %v542 = vadd.f32 0.0, %v541
    %v543 = vpop.f32.mrf.mxu0
    %544 = vmatprep.mubr.bf16.mxu0 0
    %545 = vmatmul.mubr.bf16.gmra.mxu0 %v246
    %v546 = vpop.f32.mrf.mxu0
    %v547 = vadd.f32 0.0, %v546
    %v548 = vpop.f32.mrf.mxu0
    %v549 = vpop.f32.mrf.mxu0
    %v550 = vadd.f32 0.0, %v549
    %v551 = vpop.f32.mrf.mxu0
    %552 = vmatprep.mubr.bf16.mxu0 0
    %553 = vmatmul.mubr.bf16.gmra.mxu0 %v247
    %v554 = vpop.f32.mrf.mxu0
    %v555 = vadd.f32 0.0, %v554
    %v556 = vpop.f32.mrf.mxu0
    %v557 = vpop.f32.mrf.mxu0
    %v558 = vadd.f32 0.0, %v557
    %v559 = vpop.f32.mrf.mxu0
    %560 = vmatprep.mubr.bf16.mxu0 0
    %561 = vmatmul.mubr.bf16.gmra.mxu0 %v248
    %v562 = vpop.f32.mrf.mxu0
    %v563 = vadd.f32 0.0, %v562
    %v564 = vpop.f32.mrf.mxu0
    %v565 = vpop.f32.mrf.mxu0
    %v566 = vadd.f32 0.0, %v565
    %v567 = vpop.f32.mrf.mxu0
    %568 = vmatprep.mubr.bf16.mxu0 0
    %569 = vmatmul.mubr.bf16.gmra.mxu0 %v249
    %v570 = vpop.f32.mrf.mxu0
    %v571 = vadd.f32 0.0, %v570
    %v572 = vpop.f32.mrf.mxu0
    %v573 = vpop.f32.mrf.mxu0
    %v574 = vadd.f32 0.0, %v573
    %v575 = vpop.f32.mrf.mxu0
    %576 = vmatprep.mubr.bf16.mxu0 0
    %577 = vmatmul.mubr.bf16.gmra.mxu0 %v250
    %v578 = vpop.f32.mrf.mxu0
    %v579 = vadd.f32 0.0, %v578
    %v580 = vpop.f32.mrf.mxu0
    %v581 = vpop.f32.mrf.mxu0
    %v582 = vadd.f32 0.0, %v581
    %v583 = vpop.f32.mrf.mxu0
    %584 = vmatprep.mubr.bf16.mxu0 0
    %585 = vmatmul.mubr.bf16.gmra.mxu0 %v251
    %v586 = vpop.f32.mrf.mxu0
    %v587 = vadd.f32 0.0, %v586
    %v588 = vpop.f32.mrf.mxu0
    %v589 = vpop.f32.mrf.mxu0
    %v590 = vadd.f32 0.0, %v589
    %v591 = vpop.f32.mrf.mxu0
    %592 = vmatprep.mubr.bf16.mxu0 0
    %593 = vmatmul.mubr.bf16.gmra.mxu0 %v252
    %v594 = vpop.f32.mrf.mxu0
    %v595 = vadd.f32 0.0, %v594
    %v596 = vpop.f32.mrf.mxu0
    %v597 = vpop.f32.mrf.mxu0
    %v598 = vadd.f32 0.0, %v597
    %v599 = vpop.f32.mrf.mxu0
    %600 = vmatprep.mubr.bf16.mxu0 0
    %601 = vmatmul.mubr.bf16.gmra.mxu0 %v253
    %v602 = vpop.f32.mrf.mxu0
    %v603 = vadd.f32 0.0, %v602
    %v604 = vpop.f32.mrf.mxu0
    %v605 = vpop.f32.mrf.mxu0
    %v606 = vadd.f32 0.0, %v605
    %v607 = vpop.f32.mrf.mxu0
    %608 = vmatprep.mubr.bf16.mxu0 0
    %609 = vmatmul.mubr.bf16.gmra.mxu0 %v254
    %v610 = vpop.f32.mrf.mxu0
    %v611 = vadd.f32 0.0, %v610
    %v612 = vpop.f32.mrf.mxu0
    %v613 = vpop.f32.mrf.mxu0
    %v614 = vadd.f32 0.0, %v613
    %v615 = vpop.f32.mrf.mxu0
    %616 = vmatprep.mubr.bf16.mxu0 0
    %617 = vmatmul.mubr.bf16.gmra.mxu0 %v255
    %v618 = vpop.f32.mrf.mxu0
    %v619 = vadd.f32 0.0, %v618
    %v620 = vpop.f32.mrf.mxu0
    %v621 = vpop.f32.mrf.mxu0
    %v622 = vadd.f32 0.0, %v621
    %v623 = vpop.f32.mrf.mxu0
    %624 = vdwg.mxu0
    %v625 = vld [vmem:[%s2] sm:$0x1]
    %v626 = vlaneseq
    %v627 = vshrl.u32 %v626, 7
    %v628 = vsub.s32 0, %v627
    %v629 = vrot.slane %v625, %v628
    %v630 = vmul.f32 %v371, %v629
    %v631 = vmul.f32 %v374, %v629
    %v632 = vmul.f32 %v379, %v629
    %v633 = vmul.f32 %v382, %v629
    %v634 = vmul.f32 %v387, %v629
    %v635 = vmul.f32 %v390, %v629
    %v636 = vmul.f32 %v395, %v629
    %v637 = vmul.f32 %v398, %v629
    %v638 = vmul.f32 %v403, %v629
    %v639 = vmul.f32 %v406, %v629
    %v640 = vmul.f32 %v411, %v629
    %v641 = vmul.f32 %v414, %v629
    %v642 = vmul.f32 %v419, %v629
    %v643 = vmul.f32 %v422, %v629
    %v644 = vmul.f32 %v427, %v629
    %v645 = vmul.f32 %v430, %v629
    %v646 = vmul.f32 %v435, %v629
    %v647 = vmul.f32 %v438, %v629
    %v648 = vmul.f32 %v443, %v629
    %v649 = vmul.f32 %v446, %v629
    %v650 = vmul.f32 %v451, %v629
    %v651 = vmul.f32 %v454, %v629
    %v652 = vmul.f32 %v459, %v629
    %v653 = vmul.f32 %v462, %v629
    %v654 = vmul.f32 %v467, %v629
    %v655 = vmul.f32 %v470, %v629
    %v656 = vmul.f32 %v475, %v629
    %v657 = vmul.f32 %v478, %v629
    %v658 = vmul.f32 %v483, %v629
    %v659 = vmul.f32 %v486, %v629
    %v660 = vmul.f32 %v491, %v629
    %v661 = vmul.f32 %v494, %v629
    %v662 = vmul.f32 %v499, %v629
    %v663 = vmul.f32 %v502, %v629
    %v664 = vmul.f32 %v507, %v629
    %v665 = vmul.f32 %v510, %v629
    %v666 = vmul.f32 %v515, %v629
    %v667 = vmul.f32 %v518, %v629
    %v668 = vmul.f32 %v523, %v629
    %v669 = vmul.f32 %v526, %v629
    %v670 = vmul.f32 %v531, %v629
    %v671 = vmul.f32 %v534, %v629
    %v672 = vmul.f32 %v539, %v629
    %v673 = vmul.f32 %v542, %v629
    %v674 = vmul.f32 %v547, %v629
    %v675 = vmul.f32 %v550, %v629
    %v676 = vmul.f32 %v555, %v629
    %v677 = vmul.f32 %v558, %v629
    %v678 = vmul.f32 %v563, %v629
    %v679 = vmul.f32 %v566, %v629
    %v680 = vmul.f32 %v571, %v629
    %v681 = vmul.f32 %v574, %v629
    %v682 = vmul.f32 %v579, %v629
    %v683 = vmul.f32 %v582, %v629
    %v684 = vmul.f32 %v587, %v629
    %v685 = vmul.f32 %v590, %v629
    %v686 = vmul.f32 %v595, %v629
    %v687 = vmul.f32 %v598, %v629
    %v688 = vmul.f32 %v603, %v629
    %v689 = vmul.f32 %v606, %v629
    %v690 = vmul.f32 %v611, %v629
    %v691 = vmul.f32 %v614, %v629
    %v692 = vmul.f32 %v619, %v629
    %v693 = vmul.f32 %v622, %v629
    %v694 = vld [vmem:[%s2 + $0x1] sm:$0x1]
    %v695 = vlaneseq
    %v696 = vshrl.u32 %v695, 7
    %v697 = vsub.s32 0, %v696
    %v698 = vrot.slane %v694, %v697
    %v699 = vadd.f32 %v630, %v698
    %v700 = vadd.f32 %v631, %v698
    %v701 = vadd.f32 %v632, %v698
    %v702 = vadd.f32 %v633, %v698
    %v703 = vadd.f32 %v634, %v698
    %v704 = vadd.f32 %v635, %v698
    %v705 = vadd.f32 %v636, %v698
    %v706 = vadd.f32 %v637, %v698
    %v707 = vadd.f32 %v638, %v698
    %v708 = vadd.f32 %v639, %v698
    %v709 = vadd.f32 %v640, %v698
    %v710 = vadd.f32 %v641, %v698
    %v711 = vadd.f32 %v642, %v698
    %v712 = vadd.f32 %v643, %v698
    %v713 = vadd.f32 %v644, %v698
    %v714 = vadd.f32 %v645, %v698
    %v715 = vadd.f32 %v646, %v698
    %v716 = vadd.f32 %v647, %v698
    %v717 = vadd.f32 %v648, %v698
    %v718 = vadd.f32 %v649, %v698
    %v719 = vadd.f32 %v650, %v698
    %v720 = vadd.f32 %v651, %v698
    %v721 = vadd.f32 %v652, %v698
    %v722 = vadd.f32 %v653, %v698
    %v723 = vadd.f32 %v654, %v698
    %v724 = vadd.f32 %v655, %v698
    %v725 = vadd.f32 %v656, %v698
    %v726 = vadd.f32 %v657, %v698
    %v727 = vadd.f32 %v658, %v698
    %v728 = vadd.f32 %v659, %v698
    %v729 = vadd.f32 %v660, %v698
    %v730 = vadd.f32 %v661, %v698
    %v731 = vadd.f32 %v662, %v698
    %v732 = vadd.f32 %v663, %v698
    %v733 = vadd.f32 %v664, %v698
    %v734 = vadd.f32 %v665, %v698
    %v735 = vadd.f32 %v666, %v698
    %v736 = vadd.f32 %v667, %v698
    %v737 = vadd.f32 %v668, %v698
    %v738 = vadd.f32 %v669, %v698
    %v739 = vadd.f32 %v670, %v698
    %v740 = vadd.f32 %v671, %v698
    %v741 = vadd.f32 %v672, %v698
    %v742 = vadd.f32 %v673, %v698
    %v743 = vadd.f32 %v674, %v698
    %v744 = vadd.f32 %v675, %v698
    %v745 = vadd.f32 %v676, %v698
    %v746 = vadd.f32 %v677, %v698
    %v747 = vadd.f32 %v678, %v698
    %v748 = vadd.f32 %v679, %v698
    %v749 = vadd.f32 %v680, %v698
    %v750 = vadd.f32 %v681, %v698
    %v751 = vadd.f32 %v682, %v698
    %v752 = vadd.f32 %v683, %v698
    %v753 = vadd.f32 %v684, %v698
    %v754 = vadd.f32 %v685, %v698
    %v755 = vadd.f32 %v686, %v698
    %v756 = vadd.f32 %v687, %v698
    %v757 = vadd.f32 %v688, %v698
    %v758 = vadd.f32 %v689, %v698
    %v759 = vadd.f32 %v690, %v698
    %v760 = vadd.f32 %v691, %v698
    %v761 = vadd.f32 %v692, %v698
    %v762 = vadd.f32 %v693, %v698
    %v763 = vmax.f32 %v699, 0.0
    %v764 = vmax.f32 %v700, 0.0
    %v765 = vmax.f32 %v701, 0.0
    %v766 = vmax.f32 %v702, 0.0
    %v767 = vmax.f32 %v703, 0.0
    %v768 = vmax.f32 %v704, 0.0
    %v769 = vmax.f32 %v705, 0.0
    %v770 = vmax.f32 %v706, 0.0
    %v771 = vmax.f32 %v707, 0.0
    %v772 = vmax.f32 %v708, 0.0
    %v773 = vmax.f32 %v709, 0.0
    %v774 = vmax.f32 %v710, 0.0
    %v775 = vmax.f32 %v711, 0.0
    %v776 = vmax.f32 %v712, 0.0
    %v777 = vmax.f32 %v713, 0.0
    %v778 = vmax.f32 %v714, 0.0
    %v779 = vmax.f32 %v715, 0.0
    %v780 = vmax.f32 %v716, 0.0
    %v781 = vmax.f32 %v717, 0.0
    %v782 = vmax.f32 %v718, 0.0
    %v783 = vmax.f32 %v719, 0.0
    %v784 = vmax.f32 %v720, 0.0
    %v785 = vmax.f32 %v721, 0.0
    %v786 = vmax.f32 %v722, 0.0
    %v787 = vmax.f32 %v723, 0.0
    %v788 = vmax.f32 %v724, 0.0
    %v789 = vmax.f32 %v725, 0.0
    %v790 = vmax.f32 %v726, 0.0
    %v791 = vmax.f32 %v727, 0.0
    %v792 = vmax.f32 %v728, 0.0
    %v793 = vmax.f32 %v729, 0.0
    %v794 = vmax.f32 %v730, 0.0
    %v795 = vmax.f32 %v731, 0.0
    %v796 = vmax.f32 %v732, 0.0
    %v797 = vmax.f32 %v733, 0.0
    %v798 = vmax.f32 %v734, 0.0
    %v799 = vmax.f32 %v735, 0.0
    %v800 = vmax.f32 %v736, 0.0
    %v801 = vmax.f32 %v737, 0.0
    %v802 = vmax.f32 %v738, 0.0
    %v803 = vmax.f32 %v739, 0.0
    %v804 = vmax.f32 %v740, 0.0
    %v805 = vmax.f32 %v741, 0.0
    %v806 = vmax.f32 %v742, 0.0
    %v807 = vmax.f32 %v743, 0.0
    %v808 = vmax.f32 %v744, 0.0
    %v809 = vmax.f32 %v745, 0.0
    %v810 = vmax.f32 %v746, 0.0
    %v811 = vmax.f32 %v747, 0.0
    %v812 = vmax.f32 %v748, 0.0
    %v813 = vmax.f32 %v749, 0.0
    %v814 = vmax.f32 %v750, 0.0
    %v815 = vmax.f32 %v751, 0.0
    %v816 = vmax.f32 %v752, 0.0
    %v817 = vmax.f32 %v753, 0.0
    %v818 = vmax.f32 %v754, 0.0
    %v819 = vmax.f32 %v755, 0.0
    %v820 = vmax.f32 %v756, 0.0
    %v821 = vmax.f32 %v757, 0.0
    %v822 = vmax.f32 %v758, 0.0
    %v823 = vmax.f32 %v759, 0.0
    %v824 = vmax.f32 %v760, 0.0
    %v825 = vmax.f32 %v761, 0.0
    %v826 = vmax.f32 %v762, 0.0
    %827 = vst [vmem:[#allocation2] sm:$0xff] %v763
    %828 = vst [vmem:[#allocation2 + $0x8] sm:$0xff] %v764
    %829 = vst [vmem:[#allocation2 + $0x10] sm:$0xff] %v765
    %830 = vst [vmem:[#allocation2 + $0x18] sm:$0xff] %v766
    %831 = vst [vmem:[#allocation2 + $0x20] sm:$0xff] %v767
    %832 = vst [vmem:[#allocation2 + $0x28] sm:$0xff] %v768
    %833 = vst [vmem:[#allocation2 + $0x30] sm:$0xff] %v769
    %834 = vst [vmem:[#allocation2 + $0x38] sm:$0xff] %v770
    %835 = vst [vmem:[#allocation2 + $0x40] sm:$0xff] %v771
    %836 = vst [vmem:[#allocation2 + $0x48] sm:$0xff] %v772
    %837 = vst [vmem:[#allocation2 + $0x50] sm:$0xff] %v773
    %838 = vst [vmem:[#allocation2 + $0x58] sm:$0xff] %v774
    %839 = vst [vmem:[#allocation2 + $0x60] sm:$0xff] %v775
    %840 = vst [vmem:[#allocation2 + $0x68] sm:$0xff] %v776
    %841 = vst [vmem:[#allocation2 + $0x70] sm:$0xff] %v777
    %842 = vst [vmem:[#allocation2 + $0x78] sm:$0xff] %v778
    %843 = vst [vmem:[#allocation2 + $0x80] sm:$0xff] %v779
    %844 = vst [vmem:[#allocation2 + $0x88] sm:$0xff] %v780
    %845 = vst [vmem:[#allocation2 + $0x90] sm:$0xff] %v781
    %846 = vst [vmem:[#allocation2 + $0x98] sm:$0xff] %v782
    %847 = vst [vmem:[#allocation2 + $0xa0] sm:$0xff] %v783
    %848 = vst [vmem:[#allocation2 + $0xa8] sm:$0xff] %v784
    %849 = vst [vmem:[#allocation2 + $0xb0] sm:$0xff] %v785
    %850 = vst [vmem:[#allocation2 + $0xb8] sm:$0xff] %v786
    %851 = vst [vmem:[#allocation2 + $0xc0] sm:$0xff] %v787
    %852 = vst [vmem:[#allocation2 + $0xc8] sm:$0xff] %v788
    %853 = vst [vmem:[#allocation2 + $0xd0] sm:$0xff] %v789
    %854 = vst [vmem:[#allocation2 + $0xd8] sm:$0xff] %v790
    %855 = vst [vmem:[#allocation2 + $0xe0] sm:$0xff] %v791
    %856 = vst [vmem:[#allocation2 + $0xe8] sm:$0xff] %v792
    %857 = vst [vmem:[#allocation2 + $0xf0] sm:$0xff] %v793
    %858 = vst [vmem:[#allocation2 + $0xf8] sm:$0xff] %v794
    %859 = vst [vmem:[#allocation2 + $0x100] sm:$0xff] %v795
    %860 = vst [vmem:[#allocation2 + $0x108] sm:$0xff] %v796
    %861 = vst [vmem:[#allocation2 + $0x110] sm:$0xff] %v797
    %862 = vst [vmem:[#allocation2 + $0x118] sm:$0xff] %v798
    %863 = vst [vmem:[#allocation2 + $0x120] sm:$0xff] %v799
    %864 = vst [vmem:[#allocation2 + $0x128] sm:$0xff] %v800
    %865 = vst [vmem:[#allocation2 + $0x130] sm:$0xff] %v801
    %866 = vst [vmem:[#allocation2 + $0x138] sm:$0xff] %v802
    %867 = vst [vmem:[#allocation2 + $0x140] sm:$0xff] %v803
    %868 = vst [vmem:[#allocation2 + $0x148] sm:$0xff] %v804
    %869 = vst [vmem:[#allocation2 + $0x150] sm:$0xff] %v805
    %870 = vst [vmem:[#allocation2 + $0x158] sm:$0xff] %v806
    %871 = vst [vmem:[#allocation2 + $0x160] sm:$0xff] %v807
    %872 = vst [vmem:[#allocation2 + $0x168] sm:$0xff] %v808
    %873 = vst [vmem:[#allocation2 + $0x170] sm:$0xff] %v809
    %874 = vst [vmem:[#allocation2 + $0x178] sm:$0xff] %v810
    %875 = vst [vmem:[#allocation2 + $0x180] sm:$0xff] %v811
    %876 = vst [vmem:[#allocation2 + $0x188] sm:$0xff] %v812
    %877 = vst [vmem:[#allocation2 + $0x190] sm:$0xff] %v813
    %878 = vst [vmem:[#allocation2 + $0x198] sm:$0xff] %v814
    %879 = vst [vmem:[#allocation2 + $0x1a0] sm:$0xff] %v815
    %880 = vst [vmem:[#allocation2 + $0x1a8] sm:$0xff] %v816
    %881 = vst [vmem:[#allocation2 + $0x1b0] sm:$0xff] %v817
    %882 = vst [vmem:[#allocation2 + $0x1b8] sm:$0xff] %v818
    %883 = vst [vmem:[#allocation2 + $0x1c0] sm:$0xff] %v819
    %884 = vst [vmem:[#allocation2 + $0x1c8] sm:$0xff] %v820
    %885 = vst [vmem:[#allocation2 + $0x1d0] sm:$0xff] %v821
    %886 = vst [vmem:[#allocation2 + $0x1d8] sm:$0xff] %v822
    %887 = vst [vmem:[#allocation2 + $0x1e0] sm:$0xff] %v823
    %888 = vst [vmem:[#allocation2 + $0x1e8] sm:$0xff] %v824
    %889 = vst [vmem:[#allocation2 + $0x1f0] sm:$0xff] %v825
    %890 = vst [vmem:[#allocation2 + $0x1f8] sm:$0xff] %v826
    // Predicated region
    $region14: #{_lambda_.1} parent=1 // pred_check
      _
    $region15: #{_lambda_.1} parent=1 // pred_check_branch
      %892 = sbr.rel (0) target = $region17
    $region16: #{_lambda_.1} parent=1 // pred_region
      %s894 = ssub.s32 8192, 8192
      %895 = vsyncadd [#allocation3], %s894
      %s896 = sshll.u32 [#allocation2], 4
      %s897 = int_to_ptr.vmem [resolvable:$true] %s896
      %902 = dma.vmem_to_hbm [thread:$0]  %s897, 8192, %s3, [#allocation3], 128, 128, 8
    $region17: #{_lambda_.1} parent=1 // pred_fallthru
      _
    // Predicated region
    $region18: #{_lambda_.1} parent=1 // pred_check
      _
    $region19: #{_lambda_.1} parent=1 // pred_check_branch
      %904 = sbr.rel (0) target = $region21
    $region20: #{_lambda_.1} parent=1 // pred_region
      %905 = dma.done [#allocation3], 8192
    $region21: #{_lambda_.1} parent=1 // pred_fallthru
      _
    %906 = vsyncpa [#allocation3], 1

</llo_original>
